<compile_context>
chip_gen: v7x
topology: tpu7x:2x2x1
jax: 0.10.0
libtpu: 0.0.40
codegen_flags: <defaults>
</compile_context>

<pallas_src>
import functools

import jax
import jax.numpy as jnp
from jax.experimental import pallas as pl
from jax.experimental.pallas import tpu as pltpu


def dsfe_kernel(x_ref, wt_ref, gb_ref, o_ref, stats_ref, ss_ref,
                *, inv_n, eps, neg_slope):
    # x_ref: (TN, 64)   wt_ref: (64, 32)   gb_ref: (2, 32)  [gamma; beta]
    # o_ref: (TN, 32)   stats_ref: (2, 32) [sum; sumsq]     ss_ref: (2, 32) [scale; shift]
    p = pl.program_id(0)   # 0 = statistics pass, 1 = normalize pass
    t = pl.program_id(1)   # batch tile

    # Linear (bias intentionally omitted: cancelled exactly by the BN mean
    # subtraction in training mode).  MXU, f32 accumulate.
    y = jnp.dot(x_ref[...], wt_ref[...], preferred_element_type=jnp.float32)

    @pl.when(jnp.logical_and(p == 0, t == 0))
    def _init_stats():
        stats_ref[...] = jnp.zeros_like(stats_ref)

    @pl.when(p == 0)
    def _accumulate_stats():
        s1 = jnp.sum(y, axis=0, keepdims=True)        # (1, 32)
        s2 = jnp.sum(y * y, axis=0, keepdims=True)    # (1, 32)
        stats_ref[...] += jnp.concatenate([s1, s2], axis=0)
        # o_ref deliberately untouched in pass 0; it is fully rewritten in pass 1.

    @pl.when(jnp.logical_and(p == 1, t == 0))
    def _finalize_stats():
        mean = stats_ref[0:1, :] * inv_n
        var = stats_ref[1:2, :] * inv_n - mean * mean          # biased variance
        scale = gb_ref[0:1, :] * jax.lax.rsqrt(var + eps)      # gamma / sqrt(var+eps)
        shift = gb_ref[1:2, :] - mean * scale                  # beta - mean*scale
        ss_ref[...] = jnp.concatenate([scale, shift], axis=0)

    @pl.when(p == 1)
    def _normalize():
        z = y * ss_ref[0:1, :] + ss_ref[1:2, :]
        o_ref[...] = jnp.where(z >= 0, z, neg_slope * z).astype(o_ref.dtype)


def _pick_tile(n, cap=1024):
    """Largest power-of-two tile (>=8) that divides n, capped; else whole batch."""
    t = cap
    while t >= 8:
        if n % t == 0:
            return t
        t //= 2
    return n


def dsfe_prepare(weight, gamma, beta):
    """One-time parameter packing (hoist out of the per-call path)."""
    wt = jnp.asarray(weight).T                                   # (64, 32)
    gb = jnp.stack([jnp.asarray(gamma), jnp.asarray(beta)], 0)   # (2, 32)
    return wt, gb


def dsfe_apply(x, wt, gb, *, eps=1e-5, neg_slope=0.01, tile_rows=None):
    n, d_in = x.shape
    d_out = wt.shape[1]
    tn = tile_rows if tile_rows is not None else _pick_tile(n)
    assert n % tn == 0, "tile_rows must divide the batch size"
    n_tiles = n // tn

    kernel = functools.partial(
        dsfe_kernel, inv_n=1.0 / float(n), eps=float(eps),
        neg_slope=float(neg_slope))

    return pl.pallas_call(
        kernel,
        out_shape=jax.ShapeDtypeStruct((n, d_out), x.dtype),
        grid_spec=pltpu.PrefetchScalarGridSpec(
            num_scalar_prefetch=0,
            grid=(2, n_tiles),                                    # (pass, batch tile)
            in_specs=[
                pl.BlockSpec((tn, d_in), lambda p, t: (t, 0)),    # x tile (streamed twice)
                pl.BlockSpec((d_in, d_out), lambda p, t: (0, 0)), # W^T (VMEM resident)
                pl.BlockSpec((2, d_out), lambda p, t: (0, 0)),    # [gamma; beta]
            ],
            out_specs=pl.BlockSpec((tn, d_out), lambda p, t: (t, 0)),
            scratch_shapes=[
                pltpu.VMEM((2, d_out), jnp.float32),              # running [sum; sumsq]
                pltpu.VMEM((2, d_out), jnp.float32),              # fused [scale; shift]
            ],
        ),
        compiler_params=pltpu.CompilerParams(
            # Both axes carry the stats scratch -> must stay sequential.
            dimension_semantics=("arbitrary", "arbitrary"),
        ),
    )(x, wt, gb)


def dsfe_forward(x, weight, bias, gamma, beta):
    """x: (N, 64) f32; weight: (32, 64); bias/gamma/beta: (32,)."""
    del bias  # exactly cancelled by training-mode BatchNorm mean subtraction
    wt, gb = dsfe_prepare(weight, gamma, beta)
    return dsfe_apply(x, wt, gb)


def dsfe_reference(x, weight, bias, gamma, beta):
    """Pure-JAX mirror of the PyTorch module (training-mode BN, biased var)."""
    y = x @ weight.T + bias
    mean = jnp.mean(y, axis=0, keepdims=True)
    var = jnp.mean((y - mean) ** 2, axis=0, keepdims=True)
    y_hat = (y - mean) / jnp.sqrt(var + 1e-5)
    z = y_hat * gamma + beta
    return jnp.where(z >= 0, z, 0.01 * z)


if __name__ == "__main__":
    key = jax.random.PRNGKey(0)
    k_x, k_w, k_b, k_g, k_be = jax.random.split(key, 5)

    N, D_IN, D_OUT = 512, 64, 32
    x = jax.random.normal(k_x, (N, D_IN), dtype=jnp.float32)

    # Deterministic PyTorch-like init; gamma/beta perturbed so affine is exercised.
    bound = 1.0 / (D_IN ** 0.5)
    weight = jax.random.uniform(k_w, (D_OUT, D_IN), jnp.float32, -bound, bound)
    bias = jax.random.uniform(k_b, (D_OUT,), jnp.float32, -bound, bound)
    gamma = 1.0 + 0.1 * jax.random.normal(k_g, (D_OUT,), jnp.float32)
    beta = 0.1 * jax.random.normal(k_be, (D_OUT,), jnp.float32)

    wt, gb = dsfe_prepare(weight, gamma, beta)
    # tile_rows=128 -> 4 batch tiles, exercising the cross-tile BN-stat reduction.
    out = dsfe_apply(x, wt, gb, tile_rows=128)
    out = jax.block_until_ready(out)

    ref = dsfe_reference(x, weight, bias, gamma, beta)
    assert out.shape == (N, D_OUT)
    err = jnp.max(jnp.abs(out - ref))
    assert jnp.allclose(out, ref, atol=1e-4, rtol=1e-4), f"mismatch vs reference (max abs err={err})"

    print("KERNEL_OK")
</pallas_src>

<mosaic_0001>
module attributes {stable_mosaic.version = 11 : i64} {
  func.func @dsfe_kernel(%arg0: i32, %arg1: i32, %arg2: memref<128x64xf32, #tpu.memory_space<vmem>>, %arg3: memref<64x32xf32, #tpu.memory_space<vmem>>, %arg4: memref<2x32xf32, #tpu.memory_space<vmem>>, %arg5: memref<128x32xf32, #tpu.memory_space<vmem>>, %arg6: memref<2x32xf32, #tpu.memory_space<vmem>>, %arg7: memref<2x32xf32, #tpu.memory_space<vmem>>) attributes {dimension_semantics = [#tpu.dimension_semantics<arbitrary>, #tpu.dimension_semantics<arbitrary>], iteration_bounds = array<i64: 2, 4>, scalar_prefetch = 0 : i64, scratch_operands = 2 : i64, tpu.core_type = #tpu.core_type<tc>, window_params = [{transform_indices = @transform_0, window_bounds = array<i64: 128, 64>}, {pipeline_mode = #tpu.pipeline_mode<synchronous>, transform_indices = @transform_1, window_bounds = array<i64: 64, 32>}, {pipeline_mode = #tpu.pipeline_mode<synchronous>, transform_indices = @transform_2, window_bounds = array<i64: 2, 32>}, {transform_indices = @transform_3, window_bounds = array<i64: 128, 32>}]} {
    %c0 = arith.constant 0 : index
    %c0_0 = arith.constant 0 : index
    %0 = vector.load %arg2[%c0, %c0_0] : memref<128x64xf32, #tpu.memory_space<vmem>>, vector<128x64xf32>
    %c0_1 = arith.constant 0 : index
    %c0_2 = arith.constant 0 : index
    %1 = vector.load %arg3[%c0_1, %c0_2] : memref<64x32xf32, #tpu.memory_space<vmem>>, vector<64x32xf32>
    %cst = arith.constant dense<0.000000e+00> : vector<128x32xf32>
    %2 = tpu.matmul %0, %1, %cst {dimension_numbers = #tpu.dot_dimension_numbers<[1], [0], [0], [1], [0, 0, 1, 1], [], []>} : vector<128x64xf32>, vector<64x32xf32>, vector<128x32xf32> -> vector<128x32xf32>
    %c0_i32 = arith.constant 0 : i32
    %3 = arith.cmpi eq, %arg0, %c0_i32 : i32
    %c0_i32_3 = arith.constant 0 : i32
    %4 = arith.cmpi eq, %arg1, %c0_i32_3 : i32
    %5 = arith.andi %3, %4 : i1
    %6 = arith.extui %5 : i1 to i32
    %c0_i32_4 = arith.constant 0 : i32
    %7 = arith.cmpi ne, %6, %c0_i32_4 : i32
    scf.if %7 {
      %cst_11 = arith.constant 0.000000e+00 : f32
      %19 = vector.broadcast %cst_11 : f32 to vector<2x32xf32>
      %c0_12 = arith.constant 0 : index
      %c0_13 = arith.constant 0 : index
      %20 = vector.load %arg6[%c0_12, %c0_13] : memref<2x32xf32, #tpu.memory_space<vmem>>, vector<2x32xf32>
      tpu.vector_store %arg6[%c0_12, %c0_13], %19 {strides = array<i32>} : memref<2x32xf32, #tpu.memory_space<vmem>>, vector<2x32xf32>,
    } else {
    }
    %c0_i32_5 = arith.constant 0 : i32
    %8 = arith.cmpi eq, %arg0, %c0_i32_5 : i32
    %9 = arith.extui %8 : i1 to i32
    %c0_i32_6 = arith.constant 0 : i32
    %10 = arith.cmpi ne, %9, %c0_i32_6 : i32
    scf.if %10 {
      %cst_11 = arith.constant dense<0.000000e+00> : vector<32xf32>
      %19 = vector.multi_reduction <add>, %2, %cst_11 [0] : vector<128x32xf32> to vector<32xf32>
      %20 = vector.shape_cast %19 : vector<32xf32> to vector<1x32xf32>
      %21 = arith.mulf %2, %2 : vector<128x32xf32>
      %cst_12 = arith.constant dense<0.000000e+00> : vector<32xf32>
      %22 = vector.multi_reduction <add>, %21, %cst_12 [0] : vector<128x32xf32> to vector<32xf32>
      %23 = vector.shape_cast %22 : vector<32xf32> to vector<1x32xf32>
      %c0_13 = arith.constant 0 : index
      %c0_14 = arith.constant 0 : index
      %24 = vector.load %arg6[%c0_13, %c0_14] : memref<2x32xf32, #tpu.memory_space<vmem>>, vector<2x32xf32>
      %25 = tpu.concatenate %20, %23 in 0 : vector<1x32xf32>, vector<1x32xf32> -> vector<2x32xf32>
      %26 = arith.addf %24, %25 : vector<2x32xf32>
      %c0_15 = arith.constant 0 : index
      %c0_16 = arith.constant 0 : index
      %27 = vector.load %arg6[%c0_15, %c0_16] : memref<2x32xf32, #tpu.memory_space<vmem>>, vector<2x32xf32>
      tpu.vector_store %arg6[%c0_15, %c0_16], %26 {strides = array<i32>} : memref<2x32xf32, #tpu.memory_space<vmem>>, vector<2x32xf32>,
    } else {
    }
    %c1_i32 = arith.constant 1 : i32
    %11 = arith.cmpi eq, %arg0, %c1_i32 : i32
    %c0_i32_7 = arith.constant 0 : i32
    %12 = arith.cmpi eq, %arg1, %c0_i32_7 : i32
    %13 = arith.andi %11, %12 : i1
    %14 = arith.extui %13 : i1 to i32
    %c0_i32_8 = arith.constant 0 : i32
    %15 = arith.cmpi ne, %14, %c0_i32_8 : i32
    scf.if %15 {
      %c0_11 = arith.constant 0 : index
      %c0_12 = arith.constant 0 : index
      %19 = vector.load %arg6[%c0_11, %c0_12] : memref<2x32xf32, #tpu.memory_space<vmem>>, vector<1x32xf32>
      %cst_13 = arith.constant 0.001953125 : f32
      %20 = vector.broadcast %cst_13 : f32 to vector<1x32xf32>
      %21 = arith.mulf %19, %20 : vector<1x32xf32>
      %c1 = arith.constant 1 : index
      %c0_14 = arith.constant 0 : index
      %22 = vector.load %arg6[%c1, %c0_14] : memref<2x32xf32, #tpu.memory_space<vmem>>, vector<1x32xf32>
      %cst_15 = arith.constant 0.001953125 : f32
      %23 = vector.broadcast %cst_15 : f32 to vector<1x32xf32>
      %24 = arith.mulf %22, %23 : vector<1x32xf32>
      %25 = arith.mulf %21, %21 : vector<1x32xf32>
      %26 = arith.subf %24, %25 : vector<1x32xf32>
      %c0_16 = arith.constant 0 : index
      %c0_17 = arith.constant 0 : index
      %27 = vector.load %arg4[%c0_16, %c0_17] : memref<2x32xf32, #tpu.memory_space<vmem>>, vector<1x32xf32>
      %cst_18 = arith.constant 9.99999974E-6 : f32
      %28 = vector.broadcast %cst_18 : f32 to vector<1x32xf32>
      %29 = arith.addf %26, %28 : vector<1x32xf32>
      %30 = math.rsqrt %29 : vector<1x32xf32>
      %31 = arith.mulf %27, %30 : vector<1x32xf32>
      %c1_19 = arith.constant 1 : index
      %c0_20 = arith.constant 0 : index
      %32 = vector.load %arg4[%c1_19, %c0_20] : memref<2x32xf32, #tpu.memory_space<vmem>>, vector<1x32xf32>
      %33 = arith.mulf %21, %31 : vector<1x32xf32>
      %34 = arith.subf %32, %33 : vector<1x32xf32>
      %35 = tpu.concatenate %31, %34 in 0 : vector<1x32xf32>, vector<1x32xf32> -> vector<2x32xf32>
      %c0_21 = arith.constant 0 : index
      %c0_22 = arith.constant 0 : index
      %36 = vector.load %arg7[%c0_21, %c0_22] : memref<2x32xf32, #tpu.memory_space<vmem>>, vector<2x32xf32>
      tpu.vector_store %arg7[%c0_21, %c0_22], %35 {strides = array<i32>} : memref<2x32xf32, #tpu.memory_space<vmem>>, vector<2x32xf32>,
    } else {
    }
    %c1_i32_9 = arith.constant 1 : i32
    %16 = arith.cmpi eq, %arg0, %c1_i32_9 : i32
    %17 = arith.extui %16 : i1 to i32
    %c0_i32_10 = arith.constant 0 : i32
    %18 = arith.cmpi ne, %17, %c0_i32_10 : i32
    scf.if %18 {
      %c0_11 = arith.constant 0 : index
      %c0_12 = arith.constant 0 : index
      %19 = vector.load %arg7[%c0_11, %c0_12] : memref<2x32xf32, #tpu.memory_space<vmem>>, vector<1x32xf32>
      %20 = vector.broadcast %19 : vector<1x32xf32> to vector<128x32xf32>
      %21 = arith.mulf %2, %20 : vector<128x32xf32>
      %c1 = arith.constant 1 : index
      %c0_13 = arith.constant 0 : index
      %22 = vector.load %arg7[%c1, %c0_13] : memref<2x32xf32, #tpu.memory_space<vmem>>, vector<1x32xf32>
      %23 = vector.broadcast %22 : vector<1x32xf32> to vector<128x32xf32>
      %24 = arith.addf %21, %23 : vector<128x32xf32>
      %cst_14 = arith.constant 0.000000e+00 : f32
      %25 = vector.broadcast %cst_14 : f32 to vector<128x32xf32>
      %26 = arith.cmpf oge, %24, %25 : vector<128x32xf32>
      %cst_15 = arith.constant 0.00999999977 : f32
      %27 = vector.broadcast %cst_15 : f32 to vector<128x32xf32>
      %28 = arith.mulf %27, %24 : vector<128x32xf32>
      %29 = arith.select %26, %24, %28 : vector<128x32xi1>, vector<128x32xf32>
      %c0_16 = arith.constant 0 : index
      %c0_17 = arith.constant 0 : index
      %30 = vector.load %arg5[%c0_16, %c0_17] : memref<128x32xf32, #tpu.memory_space<vmem>>, vector<128x32xf32>
      tpu.vector_store %arg5[%c0_16, %c0_17], %29 {strides = array<i32>} : memref<128x32xf32, #tpu.memory_space<vmem>>, vector<128x32xf32>,
    } else {
    }
    return
  }
  func.func @transform_0(%arg0: i32, %arg1: i32) -> (i32, i32) {
    %c0_i32 = arith.constant 0 : i32
    %c0_i32_0 = arith.constant 0 : i32
    return %arg1, %c0_i32 : i32, i32
  }
  func.func @transform_1(%arg0: i32, %arg1: i32) -> (i32, i32) {
    %c0_i32 = arith.constant 0 : i32
    %c0_i32_0 = arith.constant 0 : i32
    %c0_i32_1 = arith.constant 0 : i32
    return %c0_i32, %c0_i32_0 : i32, i32
  }
  func.func @transform_2(%arg0: i32, %arg1: i32) -> (i32, i32) {
    %c0_i32 = arith.constant 0 : i32
    %c0_i32_0 = arith.constant 0 : i32
    %c0_i32_1 = arith.constant 0 : i32
    return %c0_i32, %c0_i32_0 : i32, i32
  }
  func.func @transform_3(%arg0: i32, %arg1: i32) -> (i32, i32) {
    %c0_i32 = arith.constant 0 : i32
    %c0_i32_0 = arith.constant 0 : i32
    return %arg1, %c0_i32 : i32, i32
  }
}

</mosaic_0001>

<llo_original>
// kernel: tpu_custom_call.1
$region0: #{tpu_custom_call.1}
  #allocation0 [shape = 'u32[]', space=smem, size = 0x4, offset = 0x4, fixed_abs, tag = 'smem constant byte address 0x4 - core index']
  #allocation1 [shape = 'u32[144,128]{1,0:T(1,128)}', space=vmem, size = 0x12000, scoped, tag = 'internal scratch']
  #allocation2 [shape = 'f32[2,32]{1,0:T(2,128)}', space=vmem, size = 0x400, scoped, tag = 'scratch operand']
  #allocation3 [shape = 'f32[2,32]{1,0:T(2,128)}', space=vmem, size = 0x400, scoped, tag = 'scratch operand']
  %s0 = inlined_call_operand.vmem [shape: f32[512,64], index: 0, kind: input, shape index: {}]
  %s1 = inlined_call_operand.vmem [shape: f32[64,32], index: 1, kind: input, shape index: {}]
  %s2 = inlined_call_operand.vmem [shape: f32[2,32], index: 2, kind: input, shape index: {}]
  %s3 = inlined_call_operand.vmem [shape: f32[512,32], index: 3, kind: output, shape index: {}]
  %s4 = sld [smem:[#allocation0]]
  $region61: #{tpu_custom_call.1} parent=0
    _
  %s6 = ssub.s32 1, %s4
  %s7 = scalar_select 0, %s6, %s4
  loop: start=0, step=1, limit=10
  $region2: #{tpu_custom_call.1} parent=0 // loop_pre_header
    _
  $region3: #{tpu_custom_call.1} parent=0 // loop_header
    %s9 = sphi 0, %s13
    %p10 = scmp.ge.s32.totalorder %s9, 10
    %s16 = sphi 0, %s28
    %s17 = sphi 0, %s24
    %s18 = sphi 0, %s16
    %s19 = sphi 0, %s17
    %s20 = sphi 0, %s18
    %s21 = sphi 0, %s19
    %s31 = sphi 0, %s33
    %s34 = sphi 0, %s31
    %s35 = sphi 0, %s34
    %s51 = sphi 0, %s35
    %s55 = sphi 0, %s55
    %s57 = sphi 0, %s55
    %s58 = sphi 0, %s57
    %s72 = sphi 0, %s58
    %s76 = sphi 0, %s76
    %s78 = sphi 0, %s76
    %s79 = sphi 0, %s78
    %s93 = sphi 0, %s79
    %s99 = sphi 0, %s101
    %s102 = sphi 0, %s99
    %s103 = sphi 0, %s102
    %s119 = sphi 0, %s103
  $region4: #{tpu_custom_call.1} parent=0 // loop_header_branch
    %12 = sbr.rel (%p10) target = $region8
  $region5: #{tpu_custom_call.1} parent=0 // loop_body
    %s14 = ssub.s32 %s9, 1
    %s15 = ssub.s32 %s9, 2
    %s22 = sadd.s32 1, %s17
    %p23 = scmp.ge.s32.totalorder %s22, 4
    %s24 = scalar_select %p23, 0, %s22
    %s25 = sadd.s32 1, %s16
    %s26 = scalar_select %p23, %s25, %s16
    %p27 = scmp.ge.s32.totalorder %s26, 2
    %s28 = scalar_select %p27, 0, %s26
    %s29 = ssub.s32 %s17, %s24
    %p30 = scmp.eq.s32.totalorder %s29, 0
    %s32 = sadd.s32 %s31, 1
    %s33 = scalar_select %p30, %s31, %s32
    %p36 = pneg %p30
    %p37 = scmp.eq.s32.totalorder %s9, 7
    %p38 = por %p36, %p37
    %p39 = scmp.ne.s32.totalorder %s31, %s34
    %p40 = scmp.eq.s32.totalorder %s9, 0
    %p41 = por %p39, %p40
    %p42 = scmp.ne.s32.totalorder %s31, %s34
    %p43 = scmp.eq.s32.totalorder %s14, 7
    %p44 = por %p42, %p43
    %p45 = scmp.ne.s32.totalorder %s34, %s35
    %p46 = scmp.eq.s32.totalorder %s14, 0
    %p47 = por %p45, %p46
    %p48 = scmp.ne.s32.totalorder %s34, %s35
    %p49 = scmp.eq.s32.totalorder %s15, 7
    %p50 = por %p48, %p49
    %p52 = scmp.ne.s32.totalorder %s35, %s51
    %p53 = scmp.eq.s32.totalorder %s15, 0
    %p54 = por %p52, %p53
    %s56 = sadd.s32 %s55, 1
    %p59 = scmp.eq.s32.totalorder %s9, 7
    %p60 = scmp.ne.s32.totalorder %s55, %s57
    %p61 = scmp.eq.s32.totalorder %s9, 0
    %p62 = por %p60, %p61
    %p63 = scmp.ne.s32.totalorder %s55, %s57
    %p64 = scmp.eq.s32.totalorder %s14, 7
    %p65 = por %p63, %p64
    %p66 = scmp.ne.s32.totalorder %s57, %s58
    %p67 = scmp.eq.s32.totalorder %s14, 0
    %p68 = por %p66, %p67
    %p69 = scmp.ne.s32.totalorder %s57, %s58
    %p70 = scmp.eq.s32.totalorder %s15, 7
    %p71 = por %p69, %p70
    %p73 = scmp.ne.s32.totalorder %s58, %s72
    %p74 = scmp.eq.s32.totalorder %s15, 0
    %p75 = por %p73, %p74
    %s77 = sadd.s32 %s76, 1
    %p80 = scmp.eq.s32.totalorder %s9, 7
    %p81 = scmp.ne.s32.totalorder %s76, %s78
    %p82 = scmp.eq.s32.totalorder %s9, 0
    %p83 = por %p81, %p82
    %p84 = scmp.ne.s32.totalorder %s76, %s78
    %p85 = scmp.eq.s32.totalorder %s14, 7
    %p86 = por %p84, %p85
    %p87 = scmp.ne.s32.totalorder %s78, %s79
    %p88 = scmp.eq.s32.totalorder %s14, 0
    %p89 = por %p87, %p88
    %p90 = scmp.ne.s32.totalorder %s78, %s79
    %p91 = scmp.eq.s32.totalorder %s15, 7
    %p92 = por %p90, %p91
    %p94 = scmp.ne.s32.totalorder %s79, %s93
    %p95 = scmp.eq.s32.totalorder %s15, 0
    %p96 = por %p94, %p95
    %s97 = ssub.s32 %s17, %s24
    %p98 = scmp.eq.s32.totalorder %s97, 0
    %s100 = sadd.s32 %s99, 1
    %s101 = scalar_select %p98, %s99, %s100
    %p104 = pneg %p98
    %p105 = scmp.eq.s32.totalorder %s9, 7
    %p106 = por %p104, %p105
    %p107 = scmp.ne.s32.totalorder %s99, %s102
    %p108 = scmp.eq.s32.totalorder %s9, 0
    %p109 = por %p107, %p108
    %p110 = scmp.ne.s32.totalorder %s99, %s102
    %p111 = scmp.eq.s32.totalorder %s14, 7
    %p112 = por %p110, %p111
    %p113 = scmp.ne.s32.totalorder %s102, %s103
    %p114 = scmp.eq.s32.totalorder %s14, 0
    %p115 = por %p113, %p114
    %p116 = scmp.ne.s32.totalorder %s102, %s103
    %p117 = scmp.eq.s32.totalorder %s15, 7
    %p118 = por %p116, %p117
    %p120 = scmp.ne.s32.totalorder %s103, %s119
    %p121 = scmp.eq.s32.totalorder %s15, 0
    %p122 = por %p120, %p121
    %p123 = scmp.le.s32.totalorder 1, %s9
    %p124 = scmp.lt.s32.totalorder %s9, 9
    %p125 = pnand %p123, %p124
    %p126 = pneg %p125
    // Predicated region
    $region9: #{tpu_custom_call.1} parent=5 // pred_check
      _
    $region10: #{tpu_custom_call.1} parent=5 // pred_check_branch
      %128 = sbr.rel (%p125) target = $region12
    $region11: #{tpu_custom_call.1} parent=5 // pred_region
      %s129 = ssub.s32 %s9, 1
      // Predicated region
      $region13: #{tpu_custom_call.1} parent=11 // pred_check
        %p130 = pneg %p68
      $region14: #{tpu_custom_call.1} parent=11 // pred_check_branch
        %132 = sbr.rel (%p130) target = $region16
      $region15: #{tpu_custom_call.1} parent=11 // pred_region
        _
      $region16: #{tpu_custom_call.1} parent=11 // pred_fallthru
        _
      // Predicated region
      $region17: #{tpu_custom_call.1} parent=11 // pred_check
        %p133 = pneg %p89
      $region18: #{tpu_custom_call.1} parent=11 // pred_check_branch
        %135 = sbr.rel (%p133) target = $region20
      $region19: #{tpu_custom_call.1} parent=11 // pred_region
        _
      $region20: #{tpu_custom_call.1} parent=11 // pred_fallthru
        _
    $region12: #{tpu_custom_call.1} parent=5 // pred_fallthru
      _
    %p136 = scmp.lt.s32.totalorder %s9, 8
    // Predicated region
    $region21: #{tpu_custom_call.1} parent=5 // pred_check
      %p137 = pneg %p136
    $region22: #{tpu_custom_call.1} parent=5 // pred_check_branch
      %139 = sbr.rel (%p137) target = $region24
    $region23: #{tpu_custom_call.1} parent=5 // pred_region
      // Predicated region
      $region25: #{tpu_custom_call.1} parent=23 // pred_check
        %p140 = pneg %p41
      $region26: #{tpu_custom_call.1} parent=23 // pred_check_branch
        %142 = sbr.rel (%p140) target = $region28
      $region27: #{tpu_custom_call.1} parent=23 // pred_region
        %s143 = smul.u32 16, %s17
        %p144 = scmp.lt.s32.totalorder %s143, 63
        %s145 = scalar_select %p144, %s143, 63
        %s146 = smul.addr %s145, 8
        %s147 = scalar_lea.vmem %s0, %s146
        %s148 = smul.u32 16, %s17
      $region28: #{tpu_custom_call.1} parent=23 // pred_fallthru
        _
    $region24: #{tpu_custom_call.1} parent=5 // pred_fallthru
      _
    %p149 = scmp.le.s32.totalorder 1, %s9
    %p150 = scmp.lt.s32.totalorder %s9, 9
    %p151 = pnand %p149, %p150
    %p152 = pneg %p151
    // Predicated region
    $region29: #{tpu_custom_call.1} parent=5 // pred_check
      _
    $region30: #{tpu_custom_call.1} parent=5 // pred_check_branch
      %154 = sbr.rel (%p151) target = $region32
    $region31: #{tpu_custom_call.1} parent=5 // pred_region
      %s155 = ssub.s32 %s9, 1
      %s156 = smul.u32 16, %s19
      %p157 = scmp.lt.s32.totalorder %s156, 63
      %s158 = scalar_select %p157, %s156, 63
      %s159 = smul.addr %s158, 8
      %s160 = scalar_lea.vmem %s0, %s159
      %p161 = pneg %p47
      %p162 = pneg %p44
      %p163 = pneg %p68
      %p164 = pneg %p65
      %p165 = pneg %p89
      %p166 = pneg %p86
      %p167 = pneg %p115
      %p168 = pneg %p112
      %s169 = smul.u32 16, %s19
      %p170 = scmp.lt.s32.totalorder %s169, 63
      %s171 = scalar_select %p170, %s169, 63
      %s172 = smul.addr %s171, 8
      %s173 = scalar_lea.vmem %s3, %s172
      %s174 = smul.u32 16, %s19
      %p175 = scmp.lt.s32.totalorder %s174, 63
      %s176 = scalar_select %p175, %s174, 63
      %s177 = smul.addr %s176, 8
      %s178 = scalar_lea.vmem %s0, %s177
      %s179 = smul.u32 16, %s19
      %s180 = smul.u32 16, %s19
      %p181 = scmp.lt.s32.totalorder %s180, 63
      %s182 = scalar_select %p181, %s180, 63
      %s183 = smul.addr %s182, 8
      %s184 = scalar_lea.vmem %s3, %s183
      %s185 = smul.u32 16, %s19
      %v186 = vld [vmem:[%s178] sm:$0xff]
      %v187 = vld [vmem:[%s178 + $0x8] sm:$0xff]
      %v188 = vld [vmem:[%s178 + $0x10] sm:$0xff]
      %v189 = vld [vmem:[%s178 + $0x18] sm:$0xff]
      %v190 = vld [vmem:[%s178 + $0x20] sm:$0xff]
      %v191 = vld [vmem:[%s178 + $0x28] sm:$0xff]
      %v192 = vld [vmem:[%s178 + $0x30] sm:$0xff]
      %v193 = vld [vmem:[%s178 + $0x38] sm:$0xff]
      %v194 = vld [vmem:[%s178 + $0x40] sm:$0xff]
      %v195 = vld [vmem:[%s178 + $0x48] sm:$0xff]
      %v196 = vld [vmem:[%s178 + $0x50] sm:$0xff]
      %v197 = vld [vmem:[%s178 + $0x58] sm:$0xff]
      %v198 = vld [vmem:[%s178 + $0x60] sm:$0xff]
      %v199 = vld [vmem:[%s178 + $0x68] sm:$0xff]
      %v200 = vld [vmem:[%s178 + $0x70] sm:$0xff]
      %v201 = vld [vmem:[%s178 + $0x78] sm:$0xff]
      %v202 = vld [vmem:[%s1] sm:$0xff]
      %v203 = vld [vmem:[%s1 + $0x8] sm:$0xff]
      %v204 = vld [vmem:[%s1 + $0x10] sm:$0xff]
      %v205 = vld [vmem:[%s1 + $0x18] sm:$0xff]
      %v206 = vld [vmem:[%s1 + $0x20] sm:$0xff]
      %v207 = vld [vmem:[%s1 + $0x28] sm:$0xff]
      %v208 = vld [vmem:[%s1 + $0x30] sm:$0xff]
      %v209 = vld [vmem:[%s1 + $0x38] sm:$0xff]
      %vm210 = vcmask 523264
      %v212 = vsel %vm210, %v186, 0
      %v215 = vsel %vm210, %v187, 0
      %v218 = vsel %vm210, %v188, 0
      %v221 = vsel %vm210, %v189, 0
      %v224 = vsel %vm210, %v190, 0
      %v227 = vsel %vm210, %v191, 0
      %v230 = vsel %vm210, %v192, 0
      %v233 = vsel %vm210, %v193, 0
      %v236 = vsel %vm210, %v194, 0
      %v239 = vsel %vm210, %v195, 0
      %v242 = vsel %vm210, %v196, 0
      %v245 = vsel %vm210, %v197, 0
      %v248 = vsel %vm210, %v198, 0
      %v251 = vsel %vm210, %v199, 0
      %v254 = vsel %vm210, %v200, 0
      %v257 = vsel %vm210, %v201, 0
      %259 = vmatprep.subr.mxu0 0.0
      %260 = vmatpush1.msra.mxu0 %v202
      %261 = vmatprep.subr.mxu0 0.0
      %262 = vmatpush1.msra.mxu0 %v203
      %263 = vmatprep.subr.mxu0 0.0
      %264 = vmatpush1.msra.mxu0 %v204
      %265 = vmatprep.subr.mxu0 0.0
      %266 = vmatpush1.msra.mxu0 %v205
      %267 = vmatprep.subr.mxu0 0.0
      %268 = vmatpush1.msra.mxu0 %v206
      %269 = vmatprep.subr.mxu0 0.0
      %270 = vmatpush1.msra.mxu0 %v207
      %271 = vmatprep.subr.mxu0 0.0
      %272 = vmatpush1.msra.mxu0 %v208
      %273 = vmatprep.subr.mxu0 0.0
      %274 = vmatpush1.msra.mxu0 %v209
      %275 = vmatprep.subr.mxu0 0.0
      %276 = vmatpush1.msra.mxu0 0.0
      %277 = vmatprep.subr.mxu0 0.0
      %278 = vmatpush1.msra.mxu0 0.0
      %279 = vmatprep.subr.mxu0 0.0
      %280 = vmatpush1.msra.mxu0 0.0
      %281 = vmatprep.subr.mxu0 0.0
      %282 = vmatpush1.msra.mxu0 0.0
      %283 = vmatprep.subr.mxu0 0.0
      %284 = vmatpush1.msra.mxu0 0.0
      %285 = vmatprep.subr.mxu0 0.0
      %286 = vmatpush1.msra.mxu0 0.0
      %287 = vmatprep.subr.mxu0 0.0
      %288 = vmatpush1.msra.mxu0 0.0
      %289 = vmatprep.subr.mxu0 0.0
      %290 = vmatpush1.msra.mxu0 0.0
      %291 = vmatprep.subr.mxu0 0.0
      %292 = vmatpush1.msra.mxu0 0.0
      %293 = vmatprep.subr.mxu0 0.0
      %294 = vmatpush1.msra.mxu0 0.0
      %295 = vmatprep.subr.mxu0 0.0
      %296 = vmatpush1.msra.mxu0 0.0
      %297 = vmatprep.subr.mxu0 0.0
      %298 = vmatpush1.msra.mxu0 0.0
      %299 = vmatprep.subr.mxu0 0.0
      %300 = vmatpush1.msra.mxu0 0.0
      %301 = vmatprep.subr.mxu0 0.0
      %302 = vmatpush1.msra.mxu0 0.0
      %303 = vmatprep.subr.mxu0 0.0
      %304 = vmatpush1.msra.mxu0 0.0
      %305 = vmatprep.subr.mxu0 0.0
      %306 = vmatpush1.msra.mxu0 0.0
      %307 = vmatprep.subr.mxu0 0.0
      %308 = vmatpush1.msra.mxu0 0.0
      %309 = vmatprep.subr.mxu0 0.0
      %310 = vmatpush1.msra.mxu0 0.0
      %311 = vmatprep.subr.mxu0 0.0
      %312 = vmatpush1.msra.mxu0 0.0
      %313 = vmatprep.subr.mxu0 0.0
      %314 = vmatpush1.msra.mxu0 0.0
      %315 = vmatprep.subr.mxu0 0.0
      %316 = vmatpush1.msra.mxu0 0.0
      %317 = vmatprep.subr.mxu0 0.0
      %318 = vmatpush1.msra.mxu0 0.0
      %319 = vmatprep.subr.mxu0 0.0
      %320 = vmatpush1.msra.mxu0 0.0
      %321 = vmatprep.subr.mxu0 0.0
      %322 = vmatpush1.msra.mxu0 0.0
      %323 = vmatprep.mubr.f32.mxu0 0.0
      %324 = vmatmul.mubr.f32.gmra.mrb[0].mxu0 %v212
      %v325 = vpop.f32.mrb[0].mxu0
      %v326 = vadd.f32 0.0, %v325
      %v327 = vpop.f32.mrb[0].mxu0
      %328 = vmatprep.mubr.f32.mxu0 0.0
      %329 = vmatmul.mubr.f32.gmra.mrb[0].mxu0 %v215
      %v330 = vpop.f32.mrb[0].mxu0
      %v331 = vadd.f32 0.0, %v330
      %v332 = vpop.f32.mrb[0].mxu0
      %333 = vmatprep.mubr.f32.mxu0 0.0
      %334 = vmatmul.mubr.f32.gmra.mrb[0].mxu0 %v218
      %v335 = vpop.f32.mrb[0].mxu0
      %v336 = vadd.f32 0.0, %v335
      %v337 = vpop.f32.mrb[0].mxu0
      %338 = vmatprep.mubr.f32.mxu0 0.0
      %339 = vmatmul.mubr.f32.gmra.mrb[0].mxu0 %v221
      %v340 = vpop.f32.mrb[0].mxu0
      %v341 = vadd.f32 0.0, %v340
      %v342 = vpop.f32.mrb[0].mxu0
      %343 = vmatprep.mubr.f32.mxu0 0.0
      %344 = vmatmul.mubr.f32.gmra.mrb[0].mxu0 %v224
      %v345 = vpop.f32.mrb[0].mxu0
      %v346 = vadd.f32 0.0, %v345
      %v347 = vpop.f32.mrb[0].mxu0
      %348 = vmatprep.mubr.f32.mxu0 0.0
      %349 = vmatmul.mubr.f32.gmra.mrb[0].mxu0 %v227
      %v350 = vpop.f32.mrb[0].mxu0
      %v351 = vadd.f32 0.0, %v350
      %v352 = vpop.f32.mrb[0].mxu0
      %353 = vmatprep.mubr.f32.mxu0 0.0
      %354 = vmatmul.mubr.f32.gmra.mrb[0].mxu0 %v230
      %v355 = vpop.f32.mrb[0].mxu0
      %v356 = vadd.f32 0.0, %v355
      %v357 = vpop.f32.mrb[0].mxu0
      %358 = vmatprep.mubr.f32.mxu0 0.0
      %359 = vmatmul.mubr.f32.gmra.mrb[0].mxu0 %v233
      %v360 = vpop.f32.mrb[0].mxu0
      %v361 = vadd.f32 0.0, %v360
      %v362 = vpop.f32.mrb[0].mxu0
      %363 = vmatprep.mubr.f32.mxu0 0.0
      %364 = vmatmul.mubr.f32.gmra.mrb[0].mxu0 %v236
      %v365 = vpop.f32.mrb[0].mxu0
      %v366 = vadd.f32 0.0, %v365
      %v367 = vpop.f32.mrb[0].mxu0
      %368 = vmatprep.mubr.f32.mxu0 0.0
      %369 = vmatmul.mubr.f32.gmra.mrb[0].mxu0 %v239
      %v370 = vpop.f32.mrb[0].mxu0
      %v371 = vadd.f32 0.0, %v370
      %v372 = vpop.f32.mrb[0].mxu0
      %373 = vmatprep.mubr.f32.mxu0 0.0
      %374 = vmatmul.mubr.f32.gmra.mrb[0].mxu0 %v242
      %v375 = vpop.f32.mrb[0].mxu0
      %v376 = vadd.f32 0.0, %v375
      %v377 = vpop.f32.mrb[0].mxu0
      %378 = vmatprep.mubr.f32.mxu0 0.0
      %379 = vmatmul.mubr.f32.gmra.mrb[0].mxu0 %v245
      %v380 = vpop.f32.mrb[0].mxu0
      %v381 = vadd.f32 0.0, %v380
      %v382 = vpop.f32.mrb[0].mxu0
      %383 = vmatprep.mubr.f32.mxu0 0.0
      %384 = vmatmul.mubr.f32.gmra.mrb[0].mxu0 %v248
      %v385 = vpop.f32.mrb[0].mxu0
      %v386 = vadd.f32 0.0, %v385
      %v387 = vpop.f32.mrb[0].mxu0
      %388 = vmatprep.mubr.f32.mxu0 0.0
      %389 = vmatmul.mubr.f32.gmra.mrb[0].mxu0 %v251
      %v390 = vpop.f32.mrb[0].mxu0
      %v391 = vadd.f32 0.0, %v390
      %v392 = vpop.f32.mrb[0].mxu0
      %393 = vmatprep.mubr.f32.mxu0 0.0
      %394 = vmatmul.mubr.f32.gmra.mrb[0].mxu0 %v254
      %v395 = vpop.f32.mrb[0].mxu0
      %v396 = vadd.f32 0.0, %v395
      %v397 = vpop.f32.mrb[0].mxu0
      %398 = vmatprep.mubr.f32.mxu0 0.0
      %399 = vmatmul.mubr.f32.gmra.mrb[0].mxu0 %v257
      %v400 = vpop.f32.mrb[0].mxu0
      %v401 = vadd.f32 0.0, %v400
      %v402 = vpop.f32.mrb[0].mxu0
      %403 = vdwg.mxu0
      %p404 = scmp.eq.s32.totalorder %s18, 0
      %p405 = scmp.eq.s32.totalorder %s19, 0
      %p406 = pnand %p404, %p405
      %p407 = pneg %p406
      // Predicated region
      $region33: #{tpu_custom_call.1} parent=31 // pred_check
        _
      $region34: #{tpu_custom_call.1} parent=31 // pred_check_branch
        %409 = sbr.rel (%p406) target = $region36
      $region35: #{tpu_custom_call.1} parent=31 // pred_region
        %vm410 = vcmask 254976
        %411 = vst.msk [vmem:[#allocation2] sm:$0x3] %vm410, 0.0
      $region36: #{tpu_custom_call.1} parent=31 // pred_fallthru
        _
      // Predicated region
      $region37: #{tpu_custom_call.1} parent=31 // pred_check
        %p412 = pneg %p404
      $region38: #{tpu_custom_call.1} parent=31 // pred_check_branch
        %414 = sbr.rel (%p412) target = $region40
      $region39: #{tpu_custom_call.1} parent=31 // pred_region
        %vm415 = vcmask 261120
        %v416 = vsel %vm415, %v326, 0.0
        %v417 = vsel %vm415, %v331, 0.0
        %v418 = vadd.f32 %v416, %v417
        %v419 = vsel %vm415, %v336, 0.0
        %v420 = vadd.f32 %v418, %v419
        %v421 = vsel %vm415, %v341, 0.0
        %v422 = vadd.f32 %v420, %v421
        %v423 = vsel %vm415, %v346, 0.0
        %v424 = vadd.f32 %v422, %v423
        %v425 = vsel %vm415, %v351, 0.0
        %v426 = vadd.f32 %v424, %v425
        %v427 = vsel %vm415, %v356, 0.0
        %v428 = vadd.f32 %v426, %v427
        %v429 = vsel %vm415, %v361, 0.0
        %v430 = vadd.f32 %v428, %v429
        %v431 = vsel %vm415, %v366, 0.0
        %v432 = vadd.f32 %v430, %v431
        %v433 = vsel %vm415, %v371, 0.0
        %v434 = vadd.f32 %v432, %v433
        %v435 = vsel %vm415, %v376, 0.0
        %v436 = vadd.f32 %v434, %v435
        %v437 = vsel %vm415, %v381, 0.0
        %v438 = vadd.f32 %v436, %v437
        %v439 = vsel %vm415, %v386, 0.0
        %v440 = vadd.f32 %v438, %v439
        %v441 = vsel %vm415, %v391, 0.0
        %v442 = vadd.f32 %v440, %v441
        %v443 = vsel %vm415, %v396, 0.0
        %v444 = vadd.f32 %v442, %v443
        %v445 = vsel %vm415, %v401, 0.0
        %v446 = vadd.f32 %v444, %v445
        %v447 = vrot.slane %v446, 4
        %v448 = vadd.f32 %v446, %v447
        %v449 = vrot.slane %v448, 2
        %v450 = vadd.f32 %v448, %v449
        %v451 = vrot.slane %v450, 1
        %v452 = vadd.f32 %v450, %v451
        %v453 = vmul.f32 %v326, %v326
        %v454 = vmul.f32 %v331, %v331
        %v455 = vmul.f32 %v336, %v336
        %v456 = vmul.f32 %v341, %v341
        %v457 = vmul.f32 %v346, %v346
        %v458 = vmul.f32 %v351, %v351
        %v459 = vmul.f32 %v356, %v356
        %v460 = vmul.f32 %v361, %v361
        %v461 = vmul.f32 %v366, %v366
        %v462 = vmul.f32 %v371, %v371
        %v463 = vmul.f32 %v376, %v376
        %v464 = vmul.f32 %v381, %v381
        %v465 = vmul.f32 %v386, %v386
        %v466 = vmul.f32 %v391, %v391
        %v467 = vmul.f32 %v396, %v396
        %v468 = vmul.f32 %v401, %v401
        %v469 = vsel %vm415, %v453, 0.0
        %v470 = vsel %vm415, %v454, 0.0
        %v471 = vadd.f32 %v469, %v470
        %v472 = vsel %vm415, %v455, 0.0
        %v473 = vadd.f32 %v471, %v472
        %v474 = vsel %vm415, %v456, 0.0
        %v475 = vadd.f32 %v473, %v474
        %v476 = vsel %vm415, %v457, 0.0
        %v477 = vadd.f32 %v475, %v476
        %v478 = vsel %vm415, %v458, 0.0
        %v479 = vadd.f32 %v477, %v478
        %v480 = vsel %vm415, %v459, 0.0
        %v481 = vadd.f32 %v479, %v480
        %v482 = vsel %vm415, %v460, 0.0
        %v483 = vadd.f32 %v481, %v482
        %v484 = vsel %vm415, %v461, 0.0
        %v485 = vadd.f32 %v483, %v484
        %v486 = vsel %vm415, %v462, 0.0
        %v487 = vadd.f32 %v485, %v486
        %v488 = vsel %vm415, %v463, 0.0
        %v489 = vadd.f32 %v487, %v488
        %v490 = vsel %vm415, %v464, 0.0
        %v491 = vadd.f32 %v489, %v490
        %v492 = vsel %vm415, %v465, 0.0
        %v493 = vadd.f32 %v491, %v492
        %v494 = vsel %vm415, %v466, 0.0
        %v495 = vadd.f32 %v493, %v494
        %v496 = vsel %vm415, %v467, 0.0
        %v497 = vadd.f32 %v495, %v496
        %v498 = vsel %vm415, %v468, 0.0
        %v499 = vadd.f32 %v497, %v498
        %v500 = vrot.slane %v499, 4
        %v501 = vadd.f32 %v499, %v500
        %v502 = vrot.slane %v501, 2
        %v503 = vadd.f32 %v501, %v502
        %v504 = vrot.slane %v503, 1
        %v505 = vadd.f32 %v503, %v504
        %v506 = vld [vmem:[#allocation2] sm:$0x3]
        %vm507 = vcmask 1040384
        %v508 = vsel %vm507, %v452, %v505
        %v509 = vadd.f32 %v506, %v508
        %vm510 = vcmask 254976
        %511 = vst.msk [vmem:[#allocation2] sm:$0x3] %vm510, %v509
      $region40: #{tpu_custom_call.1} parent=31 // pred_fallthru
        _
      %p512 = scmp.eq.s32.totalorder %s18, 1
      %p513 = pnand %p512, %p405
      %p514 = pneg %p513
      // Predicated region
      $region41: #{tpu_custom_call.1} parent=31 // pred_check
        _
      $region42: #{tpu_custom_call.1} parent=31 // pred_check_branch
        %516 = sbr.rel (%p513) target = $region44
      $region43: #{tpu_custom_call.1} parent=31 // pred_region
        %v517 = vld [vmem:[#allocation2] sm:$0x1]
        %v518 = vmul.f32 %v517, 0.001953125
        %v519 = vld [vmem:[#allocation2 + $0x1] sm:$0x1]
        %v520 = vmul.f32 %v519, 0.001953125
        %v521 = vmul.f32 %v518, %v518
        %v522 = vsub.f32 %v520, %v521
        %v523 = vld [vmem:[%s2] sm:$0x1]
        %v524 = vadd.f32 %v522, 1e-05
        %v525 = vrsqrt.pop %v524
        %v526 = vmul.f32 %v523, %v525
        %v527 = vld [vmem:[%s2 + $0x1] sm:$0x1]
        %v528 = vmul.f32 %v518, %v526
        %v529 = vsub.f32 %v527, %v528
        %v531 = vrot.slane %v529, 7
        %vm533 = vcmask 1040384
        %v534 = vsel %vm533, %v526, %v531
        %vm535 = vcmask 254976
        %536 = vst.msk [vmem:[#allocation3] sm:$0x3] %vm535, %v534
      $region44: #{tpu_custom_call.1} parent=31 // pred_fallthru
        _
      // Predicated region
      $region45: #{tpu_custom_call.1} parent=31 // pred_check
        %p537 = pneg %p512
      $region46: #{tpu_custom_call.1} parent=31 // pred_check_branch
        %539 = sbr.rel (%p537) target = $region48
      $region47: #{tpu_custom_call.1} parent=31 // pred_region
        %v540 = vld [vmem:[#allocation3] sm:$0x1]
        %v541 = vlaneseq
        %v542 = vshrl.u32 %v541, 7
        %v543 = vsub.s32 0, %v542
        %v544 = vrot.slane %v540, %v543
        %v545 = vmul.f32 %v326, %v544
        %v546 = vmul.f32 %v331, %v544
        %v547 = vmul.f32 %v336, %v544
        %v548 = vmul.f32 %v341, %v544
        %v549 = vmul.f32 %v346, %v544
        %v550 = vmul.f32 %v351, %v544
        %v551 = vmul.f32 %v356, %v544
        %v552 = vmul.f32 %v361, %v544
        %v553 = vmul.f32 %v366, %v544
        %v554 = vmul.f32 %v371, %v544
        %v555 = vmul.f32 %v376, %v544
        %v556 = vmul.f32 %v381, %v544
        %v557 = vmul.f32 %v386, %v544
        %v558 = vmul.f32 %v391, %v544
        %v559 = vmul.f32 %v396, %v544
        %v560 = vmul.f32 %v401, %v544
        %v561 = vld [vmem:[#allocation3 + $0x1] sm:$0x1]
        %v562 = vlaneseq
        %v563 = vshrl.u32 %v562, 7
        %v564 = vsub.s32 0, %v563
        %v565 = vrot.slane %v561, %v564
        %v566 = vadd.f32 %v545, %v565
        %v567 = vadd.f32 %v546, %v565
        %v568 = vadd.f32 %v547, %v565
        %v569 = vadd.f32 %v548, %v565
        %v570 = vadd.f32 %v549, %v565
        %v571 = vadd.f32 %v550, %v565
        %v572 = vadd.f32 %v551, %v565
        %v573 = vadd.f32 %v552, %v565
        %v574 = vadd.f32 %v553, %v565
        %v575 = vadd.f32 %v554, %v565
        %v576 = vadd.f32 %v555, %v565
        %v577 = vadd.f32 %v556, %v565
        %v578 = vadd.f32 %v557, %v565
        %v579 = vadd.f32 %v558, %v565
        %v580 = vadd.f32 %v559, %v565
        %v581 = vadd.f32 %v560, %v565
        %vm582 = vcmp.ge.f32.partialorder %v566, 0.0
        %vm583 = vcmp.ge.f32.partialorder %v567, 0.0
        %vm584 = vcmp.ge.f32.partialorder %v568, 0.0
        %vm585 = vcmp.ge.f32.partialorder %v569, 0.0
        %vm586 = vcmp.ge.f32.partialorder %v570, 0.0
        %vm587 = vcmp.ge.f32.partialorder %v571, 0.0
        %vm588 = vcmp.ge.f32.partialorder %v572, 0.0
        %vm589 = vcmp.ge.f32.partialorder %v573, 0.0
        %vm590 = vcmp.ge.f32.partialorder %v574, 0.0
        %vm591 = vcmp.ge.f32.partialorder %v575, 0.0
        %vm592 = vcmp.ge.f32.partialorder %v576, 0.0
        %vm593 = vcmp.ge.f32.partialorder %v577, 0.0
        %vm594 = vcmp.ge.f32.partialorder %v578, 0.0
        %vm595 = vcmp.ge.f32.partialorder %v579, 0.0
        %vm596 = vcmp.ge.f32.partialorder %v580, 0.0
        %vm597 = vcmp.ge.f32.partialorder %v581, 0.0
        %v598 = vmul.f32 %v566, 0.01
        %v599 = vmul.f32 %v567, 0.01
        %v600 = vmul.f32 %v568, 0.01
        %v601 = vmul.f32 %v569, 0.01
        %v602 = vmul.f32 %v570, 0.01
        %v603 = vmul.f32 %v571, 0.01
        %v604 = vmul.f32 %v572, 0.01
        %v605 = vmul.f32 %v573, 0.01
        %v606 = vmul.f32 %v574, 0.01
        %v607 = vmul.f32 %v575, 0.01
        %v608 = vmul.f32 %v576, 0.01
        %v609 = vmul.f32 %v577, 0.01
        %v610 = vmul.f32 %v578, 0.01
        %v611 = vmul.f32 %v579, 0.01
        %v612 = vmul.f32 %v580, 0.01
        %v613 = vmul.f32 %v581, 0.01
        %v614 = vsel %vm582, %v566, %v598
        %v615 = vsel %vm583, %v567, %v599
        %v616 = vsel %vm584, %v568, %v600
        %v617 = vsel %vm585, %v569, %v601
        %v618 = vsel %vm586, %v570, %v602
        %v619 = vsel %vm587, %v571, %v603
        %v620 = vsel %vm588, %v572, %v604
        %v621 = vsel %vm589, %v573, %v605
        %v622 = vsel %vm590, %v574, %v606
        %v623 = vsel %vm591, %v575, %v607
        %v624 = vsel %vm592, %v576, %v608
        %v625 = vsel %vm593, %v577, %v609
        %v626 = vsel %vm594, %v578, %v610
        %v627 = vsel %vm595, %v579, %v611
        %v628 = vsel %vm596, %v580, %v612
        %v629 = vsel %vm597, %v581, %v613
        %vm630 = vcmask 261120
        %631 = vst.msk [vmem:[%s184] sm:$0xff] %vm630, %v614
        %632 = vst.msk [vmem:[%s184 + $0x8] sm:$0xff] %vm630, %v615
        %633 = vst.msk [vmem:[%s184 + $0x10] sm:$0xff] %vm630, %v616
        %634 = vst.msk [vmem:[%s184 + $0x18] sm:$0xff] %vm630, %v617
        %635 = vst.msk [vmem:[%s184 + $0x20] sm:$0xff] %vm630, %v618
        %636 = vst.msk [vmem:[%s184 + $0x28] sm:$0xff] %vm630, %v619
        %637 = vst.msk [vmem:[%s184 + $0x30] sm:$0xff] %vm630, %v620
        %638 = vst.msk [vmem:[%s184 + $0x38] sm:$0xff] %vm630, %v621
        %639 = vst.msk [vmem:[%s184 + $0x40] sm:$0xff] %vm630, %v622
        %640 = vst.msk [vmem:[%s184 + $0x48] sm:$0xff] %vm630, %v623
        %641 = vst.msk [vmem:[%s184 + $0x50] sm:$0xff] %vm630, %v624
        %642 = vst.msk [vmem:[%s184 + $0x58] sm:$0xff] %vm630, %v625
        %643 = vst.msk [vmem:[%s184 + $0x60] sm:$0xff] %vm630, %v626
        %644 = vst.msk [vmem:[%s184 + $0x68] sm:$0xff] %vm630, %v627
        %645 = vst.msk [vmem:[%s184 + $0x70] sm:$0xff] %vm630, %v628
        %646 = vst.msk [vmem:[%s184 + $0x78] sm:$0xff] %vm630, %v629
      $region48: #{tpu_custom_call.1} parent=31 // pred_fallthru
        _
      %s647 = smul.u32 16, %s19
      %p648 = scmp.lt.s32.totalorder %s647, 63
      %s649 = scalar_select %p648, %s647, 63
      %s650 = smul.addr %s649, 8
      %s651 = scalar_lea.vmem %s3, %s650
      // Predicated region
      $region49: #{tpu_custom_call.1} parent=31 // pred_check
        %p652 = pneg %p112
      $region50: #{tpu_custom_call.1} parent=31 // pred_check_branch
        %654 = sbr.rel (%p652) target = $region52
      $region51: #{tpu_custom_call.1} parent=31 // pred_region
        %s655 = smul.u32 16, %s19
      $region52: #{tpu_custom_call.1} parent=31 // pred_fallthru
        _
    $region32: #{tpu_custom_call.1} parent=5 // pred_fallthru
      _
    %p656 = scmp.le.s32.totalorder 2, %s9
    // Predicated region
    $region53: #{tpu_custom_call.1} parent=5 // pred_check
      %p657 = pneg %p656
    $region54: #{tpu_custom_call.1} parent=5 // pred_check_branch
      %659 = sbr.rel (%p657) target = $region56
    $region55: #{tpu_custom_call.1} parent=5 // pred_region
      %s660 = ssub.s32 %s9, 2
      // Predicated region
      $region57: #{tpu_custom_call.1} parent=55 // pred_check
        %p661 = pneg %p118
      $region58: #{tpu_custom_call.1} parent=55 // pred_check_branch
        %663 = sbr.rel (%p661) target = $region60
      $region59: #{tpu_custom_call.1} parent=55 // pred_region
        %s664 = smul.u32 16, %s21
        %p665 = scmp.lt.s32.totalorder %s664, 63
        %s666 = scalar_select %p665, %s664, 63
        %s667 = smul.addr %s666, 8
        %s668 = scalar_lea.vmem %s3, %s667
      $region60: #{tpu_custom_call.1} parent=55 // pred_fallthru
        _
    $region56: #{tpu_custom_call.1} parent=5 // pred_fallthru
      _
  $region6: #{tpu_custom_call.1} parent=0 // loop_footer
    %s13 = sadd.s32 1, %s9
  $region7: #{tpu_custom_call.1} parent=0 // loop_footer_branch
    %8 = sbr.rel target = $region3
  $region8: #{tpu_custom_call.1} parent=0 // loop_exit
    _

</llo_original>
